<compile_context>
chip_gen: v6e
topology: v6e:2x2x1
jax: 0.10.0
libtpu: 0.0.40
codegen_flags: <defaults>
</compile_context>

<pallas_src>
import functools

import jax
import jax.numpy as jnp
from jax import lax
from jax.experimental import pallas as pl
from jax.experimental.pallas import tpu as pltpu


_NEG_BIG = -1e30                    # finite "-inf": masked entries never give inf-inf=NaN
_VMEM_LIMIT = 32 * 1024 * 1024      # valid on v5e/v6e/v7x (<= physical VMEM everywhere)


# -----------------------------------------------------------------------------
# Kernel A: lane-dense path for small num_tasks (V < 128).
# Logits are presented transposed [V, N] so examples run along the 128-lane
# axis; reductions over tasks are cheap <=V-sublane reductions.
# -----------------------------------------------------------------------------
def _router_ce_small_v_kernel(inv_temp, ignore_index, n_examples,
                              xt_ref, tgt_ref, loss_ref, cnt_ref):
    i = pl.program_id(0)
    v, t = xt_ref.shape

    # Lane validity for the (possibly ragged) last example tile.  Invalid lanes
    # are explicitly zeroed BEFORE exp/LSE so OOB garbage (NaN/Inf) cannot leak.
    col = i * t + lax.broadcasted_iota(jnp.int32, (1, t), 1)            # [1, T]
    in_range = col < n_examples                                         # [1, T]

    x = xt_ref[...]                                                     # [V, T] native dtype
    x = jnp.where(in_range, x, jnp.zeros_like(x))

    tgt = tgt_ref[...]                                                  # [1, T] int32
    valid = jnp.logical_and(in_range, tgt != ignore_index)              # [1, T]

    # Target logit via select + sum over <=V sublanes: exact in the input dtype,
    # no [V, T] one-hot f32 temporary.
    rows = lax.broadcasted_iota(jnp.int32, (v, t), 0)                   # [V, T]
    correct = jnp.sum(jnp.where(rows == tgt, x, jnp.zeros_like(x)),
                      axis=0, keepdims=True).astype(jnp.float32)        # [1, T]

    # Max in the input dtype (exact; packed bf16 VALU on v6e/v7x).
    m = jnp.max(x, axis=0, keepdims=True).astype(jnp.float32)           # [1, T]

    # Only the value feeding exp/log is upcast + temperature-scaled (f32).
    z = (x.astype(jnp.float32) - m) * inv_temp                          # [V, T] f32 (V small)
    sumexp = jnp.sum(jnp.exp(z), axis=0, keepdims=True)                 # [1, T]
    per_ex = (m - correct) * inv_temp + jnp.log(sumexp)                 # scaled CE per example

    validf = valid.astype(jnp.float32)
    loss_ref[...] = per_ex * validf                                     # lane-dense stores
    cnt_ref[...] = validf


# -----------------------------------------------------------------------------
# Kernel B: wide-vocab path.  Grid = (example tiles [parallel], vocab tiles
# [arbitrary]); flash-style online log-sum-exp in VMEM scratch keeps the f32
# working set bounded by one [tile_n, tile_v] chunk regardless of V.
# -----------------------------------------------------------------------------
def _router_ce_wide_v_kernel(inv_temp, ignore_index, n_rows, n_cols,
                             mask_rows, mask_cols,
                             x_ref, tgt_ref, loss_ref, cnt_ref,
                             m_sc, l_sc, c_sc):
    i = pl.program_id(0)
    j = pl.program_id(1)
    t_n, t_v = x_ref.shape

    @pl.when(j == 0)
    def _():
        m_sc[...] = jnp.full_like(m_sc, _NEG_BIG)
        l_sc[...] = jnp.zeros_like(l_sc)
        c_sc[...] = jnp.zeros_like(c_sc)

    x = x_ref[...]                                                      # [tn, tv] native dtype
    if mask_rows:   # ragged last example tile: zero garbage rows pre-exp
        row = i * t_n + lax.broadcasted_iota(jnp.int32, (t_n, 1), 0)
        x = jnp.where(row < n_rows, x, jnp.zeros_like(x))
    cols_abs = j * t_v + lax.broadcasted_iota(jnp.int32, (t_n, t_v), 1)
    if mask_cols:   # ragged last vocab tile: push garbage cols to -BIG
        x = jnp.where(cols_abs < n_cols, x, jnp.full_like(x, _NEG_BIG))

    tgt = tgt_ref[...]                                                  # [tn, 1] int32
    # Target-logit contribution of this vocab chunk (exact select, input dtype).
    c_chunk = jnp.sum(jnp.where(cols_abs == tgt, x, jnp.zeros_like(x)),
                      axis=-1, keepdims=True).astype(jnp.float32)       # [tn, 1]

    # Online LSE update; only the exp argument is f32 and temperature-scaled.
    m_chunk = jnp.max(x, axis=-1, keepdims=True).astype(jnp.float32)    # [tn, 1]
    m_new = jnp.maximum(m_sc[...], m_chunk)
    alpha = jnp.exp((m_sc[...] - m_new) * inv_temp)
    p = jnp.exp((x.astype(jnp.float32) - m_new) * inv_temp)             # [tn, tv] f32 chunk
    l_sc[...] = alpha * l_sc[...] + jnp.sum(p, axis=-1, keepdims=True)
    c_sc[...] = c_sc[...] + c_chunk
    m_sc[...] = m_new

    @pl.when(j == pl.num_programs(1) - 1)
    def _():
        per_row = (m_sc[...] - c_sc[...]) * inv_temp + jnp.log(l_sc[...])
        row = i * t_n + lax.broadcasted_iota(jnp.int32, (t_n, 1), 0)
        valid = jnp.logical_and(row < n_rows, tgt_ref[...] != ignore_index)
        validf = valid.astype(jnp.float32)
        loss_ref[...] = per_row * validf
        cnt_ref[...] = validf


# -----------------------------------------------------------------------------
# Wrapper: JAX/Pallas equivalent of RouterSupervisionLoss.forward
# -----------------------------------------------------------------------------
def router_supervision_loss(routing_logits, true_task_labels, *,
                            weight=1.0, temperature=1.0, ignore_index=-100,
                            example_tile=None, vocab_tile=None):
    logits = jnp.asarray(routing_logits)
    if not jnp.issubdtype(logits.dtype, jnp.floating):
        logits = logits.astype(jnp.float32)
    v = int(logits.shape[-1])
    logits = logits.reshape(-1, v)
    n = int(logits.shape[0])
    targets = jnp.asarray(true_task_labels).reshape(-1).astype(jnp.int32)

    inv_temp = 1.0 / float(temperature)
    itemsize = logits.dtype.itemsize
    # Budget off the f32 working set (2x native input for double-buffering plus
    # ~3 f32 chunk temporaries per element), NOT the raw input itemsize.
    # TODO(synk): tune per-chip via pltpu.get_tpu_info (bigger on v5e/v6e 128MiB).
    work_bytes_per_elem = 2 * itemsize + 3 * 4

    if v < 128:
        # ---- lane-dense small-num-tasks path (the actual router use case) ----
        xt = logits.T                               # [V, N]; tiny for router shapes
        tgt_row = targets.reshape(1, n)
        if example_tile is None:
            tile = (8 * 1024 * 1024) // max(v * work_bytes_per_elem + 32, 1)
            tile = max(128, min(8192, (tile // 128) * 128))
        else:
            tile = max(128, (int(example_tile) // 128) * 128)
        if n <= tile:
            tile = n                                # full dim (no raggedness)
        grid = (pl.cdiv(n, tile),)

        loss_vec, cnt_vec = pl.pallas_call(
            functools.partial(_router_ce_small_v_kernel, inv_temp,
                              int(ignore_index), n),
            out_shape=(jax.ShapeDtypeStruct((1, n), jnp.float32),
                       jax.ShapeDtypeStruct((1, n), jnp.float32)),
            grid=grid,
            in_specs=[pl.BlockSpec((v, tile), lambda i: (0, i)),
                      pl.BlockSpec((1, tile), lambda i: (0, i))],
            out_specs=(pl.BlockSpec((1, tile), lambda i: (0, i)),
                       pl.BlockSpec((1, tile), lambda i: (0, i))),
            compiler_params=pltpu.CompilerParams(
                dimension_semantics=("parallel",),
                vmem_limit_bytes=_VMEM_LIMIT),
        )(xt, tgt_row)
    else:
        # ---- wide-vocab path ----
        tgt_col = targets.reshape(n, 1)
        if vocab_tile is None:
            t_v = v if v <= 2048 else 2048
        else:
            t_v = max(128, (int(vocab_tile) // 128) * 128)
            t_v = v if v <= t_v else t_v
        if example_tile is None:
            t_n = (16 * 1024 * 1024) // max(t_v * work_bytes_per_elem + 64, 1)
            t_n = max(16, min(1024, (t_n // 16) * 16))
        else:
            t_n = max(16, (int(example_tile) // 16) * 16)
        if n <= t_n:
            t_n = n
        mask_rows = (n % t_n) != 0
        mask_cols = (v % t_v) != 0
        grid = (pl.cdiv(n, t_n), pl.cdiv(v, t_v))

        loss_vec, cnt_vec = pl.pallas_call(
            functools.partial(_router_ce_wide_v_kernel, inv_temp,
                              int(ignore_index), n, v, mask_rows, mask_cols),
            out_shape=(jax.ShapeDtypeStruct((n, 1), jnp.float32),
                       jax.ShapeDtypeStruct((n, 1), jnp.float32)),
            grid=grid,
            in_specs=[pl.BlockSpec((t_n, t_v), lambda i, j: (i, j)),
                      pl.BlockSpec((t_n, 1), lambda i, j: (i, 0))],
            out_specs=(pl.BlockSpec((t_n, 1), lambda i, j: (i, 0)),
                       pl.BlockSpec((t_n, 1), lambda i, j: (i, 0))),
            scratch_shapes=[pltpu.VMEM((t_n, 1), jnp.float32),
                            pltpu.VMEM((t_n, 1), jnp.float32),
                            pltpu.VMEM((t_n, 1), jnp.float32)],
            compiler_params=pltpu.CompilerParams(
                dimension_semantics=("parallel", "arbitrary"),
                vmem_limit_bytes=_VMEM_LIMIT),
        )(logits, tgt_col)

    # Tiny glue reduction: weight * sum(per-example loss) / num_valid.
    # NOTE: 0 valid rows -> NaN, matching torch CrossEntropyLoss(reduction='mean').
    total = jnp.sum(loss_vec)
    count = jnp.sum(cnt_vec)
    return jnp.float32(weight) * total / count


# -----------------------------------------------------------------------------
# Pure-JAX reference (for correctness checking only)
# -----------------------------------------------------------------------------
def _reference(routing_logits, labels, weight, temperature):
    x = jnp.asarray(routing_logits).astype(jnp.float32) / temperature
    logp = jax.nn.log_softmax(x, axis=-1)
    idx = jnp.asarray(labels).astype(jnp.int32)[:, None]
    nll = -jnp.take_along_axis(logp, idx, axis=-1)[:, 0]
    return weight * jnp.mean(nll)


# -----------------------------------------------------------------------------
# Example / self-test
# -----------------------------------------------------------------------------
if __name__ == "__main__":
    key = jax.random.PRNGKey(0)
    keys = jax.random.split(key, 6)

    # 1) Module-consistent shapes: batch=8, num_tasks=4 (lane-dense path).
    B, T = 8, 4
    logits1 = jax.random.normal(keys[0], (B, T), jnp.float32)
    labels1 = jax.random.randint(keys[1], (B,), 0, T, jnp.int32)
    loss1 = router_supervision_loss(logits1, labels1, weight=1.0, temperature=1.0)
    jax.block_until_ready(loss1)
    ref1 = _reference(logits1, labels1, 1.0, 1.0)
    assert jnp.isfinite(loss1), "non-finite loss (small case)"
    assert jnp.allclose(loss1, ref1, rtol=1e-5, atol=1e-5), (loss1, ref1)

    # 2) Lane-dense path: multi-tile grid, ragged tail, bf16, weight/temperature.
    N2, T2 = 300, 8
    logits2 = jax.random.normal(keys[2], (N2, T2), jnp.float32).astype(jnp.bfloat16)
    labels2 = jax.random.randint(keys[3], (N2,), 0, T2, jnp.int32)
    loss2 = router_supervision_loss(logits2, labels2, weight=2.0, temperature=1.7,
                                    example_tile=128)
    jax.block_until_ready(loss2)
    ref2 = _reference(logits2, labels2, 2.0, 1.7)
    assert jnp.isfinite(loss2), "non-finite loss (bf16 case)"
    assert jnp.allclose(loss2, ref2, rtol=2e-4, atol=2e-4), (loss2, ref2)

    # 3) Wide-vocab path: ragged example tiles + online LSE across ragged vocab tiles.
    N3, V3 = 100, 400
    logits3 = jax.random.normal(keys[4], (N3, V3), jnp.float32)
    labels3 = jax.random.randint(keys[5], (N3,), 0, V3, jnp.int32)
    loss3 = router_supervision_loss(logits3, labels3, weight=0.5, temperature=2.0,
                                    example_tile=32, vocab_tile=256)
    jax.block_until_ready(loss3)
    ref3 = _reference(logits3, labels3, 0.5, 2.0)
    assert jnp.isfinite(loss3), "non-finite loss (wide-V case)"
    assert jnp.allclose(loss3, ref3, rtol=1e-5, atol=1e-5), (loss3, ref3)

    print("KERNEL_OK")
</pallas_src>

<mosaic_0001>
module attributes {stable_mosaic.version = 11 : i64} {
  func.func @_router_ce_small_v_kernel(%arg0: i32, %arg1: memref<4x8xf32, #tpu.memory_space<vmem>>, %arg2: memref<1x8xi32, #tpu.memory_space<vmem>>, %arg3: memref<1x8xf32, #tpu.memory_space<vmem>>, %arg4: memref<1x8xf32, #tpu.memory_space<vmem>>) attributes {dimension_semantics = [#tpu.dimension_semantics<parallel>], iteration_bounds = array<i64: 1>, scalar_prefetch = 0 : i64, scratch_operands = 0 : i64, tpu.core_type = #tpu.core_type<tc>, window_params = [{transform_indices = @transform_0, window_bounds = array<i64: 4, 8>}, {transform_indices = @transform_1, window_bounds = array<i64: 1, 8>}, {transform_indices = @transform_2, window_bounds = array<i64: 1, 8>}, {transform_indices = @transform_3, window_bounds = array<i64: 1, 8>}]} {
    %c8_i32 = arith.constant 8 : i32
    %0 = arith.muli %arg0, %c8_i32 : i32
    %1 = tpu.iota {dimensions = array<i32: 1>} : vector<1x8xi32>
    %2 = vector.broadcast %0 : i32 to vector<1x8xi32>
    %3 = arith.addi %2, %1 : vector<1x8xi32>
    %c8_i32_0 = arith.constant 8 : i32
    %4 = vector.broadcast %c8_i32_0 : i32 to vector<1x8xi32>
    %5 = arith.cmpi slt, %3, %4 : vector<1x8xi32>
    %c0 = arith.constant 0 : index
    %c0_1 = arith.constant 0 : index
    %6 = vector.load %arg1[%c0, %c0_1] : memref<4x8xf32, #tpu.memory_space<vmem>>, vector<4x8xf32>
    %cst = arith.constant 0.000000e+00 : f32
    %7 = vector.broadcast %cst : f32 to vector<4x8xf32>
    %8 = vector.shape_cast %5 : vector<1x8xi1> to vector<1x8xi1>
    %9 = vector.broadcast %8 : vector<1x8xi1> to vector<4x8xi1>
    %10 = arith.select %9, %6, %7 : vector<4x8xi1>, vector<4x8xf32>
    %c0_2 = arith.constant 0 : index
    %c0_3 = arith.constant 0 : index
    %11 = vector.load %arg2[%c0_2, %c0_3] : memref<1x8xi32, #tpu.memory_space<vmem>>, vector<1x8xi32>
    %c-100_i32 = arith.constant -100 : i32
    %12 = vector.broadcast %c-100_i32 : i32 to vector<1x8xi32>
    %13 = arith.cmpi ne, %11, %12 : vector<1x8xi32>
    %14 = arith.andi %5, %13 : vector<1x8xi1>
    %15 = tpu.iota {dimensions = array<i32: 0>} : vector<4x8xi32>
    %16 = vector.broadcast %11 : vector<1x8xi32> to vector<4x8xi32>
    %17 = arith.cmpi eq, %15, %16 : vector<4x8xi32>
    %cst_4 = arith.constant 0.000000e+00 : f32
    %18 = vector.broadcast %cst_4 : f32 to vector<4x8xf32>
    %19 = arith.select %17, %10, %18 : vector<4x8xi1>, vector<4x8xf32>
    %cst_5 = arith.constant dense<0.000000e+00> : vector<8xf32>
    %20 = vector.multi_reduction <add>, %19, %cst_5 [0] : vector<4x8xf32> to vector<8xf32>
    %21 = vector.shape_cast %20 : vector<8xf32> to vector<1x8xf32>
    %cst_6 = arith.constant dense<0xFF800000> : vector<8xf32>
    %22 = vector.multi_reduction <maximumf>, %10, %cst_6 [0] : vector<4x8xf32> to vector<8xf32>
    %23 = vector.shape_cast %22 : vector<8xf32> to vector<1x8xf32>
    %24 = vector.broadcast %23 : vector<1x8xf32> to vector<4x8xf32>
    %25 = arith.subf %10, %24 : vector<4x8xf32>
    %cst_7 = arith.constant 1.000000e+00 : f32
    %26 = vector.broadcast %cst_7 : f32 to vector<4x8xf32>
    %27 = arith.mulf %25, %26 : vector<4x8xf32>
    %28 = math.exp %27 : vector<4x8xf32>
    %cst_8 = arith.constant dense<0.000000e+00> : vector<8xf32>
    %29 = vector.multi_reduction <add>, %28, %cst_8 [0] : vector<4x8xf32> to vector<8xf32>
    %30 = vector.shape_cast %29 : vector<8xf32> to vector<1x8xf32>
    %31 = arith.subf %23, %21 : vector<1x8xf32>
    %cst_9 = arith.constant 1.000000e+00 : f32
    %32 = vector.broadcast %cst_9 : f32 to vector<1x8xf32>
    %33 = arith.mulf %31, %32 : vector<1x8xf32>
    %34 = math.log %30 : vector<1x8xf32>
    %35 = arith.addf %33, %34 : vector<1x8xf32>
    %36 = arith.extui %14 : vector<1x8xi1> to vector<1x8xi32>
    %37 = arith.sitofp %36 : vector<1x8xi32> to vector<1x8xf32>
    %38 = arith.mulf %35, %37 : vector<1x8xf32>
    %c0_10 = arith.constant 0 : index
    %c0_11 = arith.constant 0 : index
    %39 = vector.load %arg3[%c0_10, %c0_11] : memref<1x8xf32, #tpu.memory_space<vmem>>, vector<1x8xf32>
    tpu.vector_store %arg3[%c0_10, %c0_11], %38 {strides = array<i32>} : memref<1x8xf32, #tpu.memory_space<vmem>>, vector<1x8xf32>,
    %c0_12 = arith.constant 0 : index
    %c0_13 = arith.constant 0 : index
    %40 = vector.load %arg4[%c0_12, %c0_13] : memref<1x8xf32, #tpu.memory_space<vmem>>, vector<1x8xf32>
    tpu.vector_store %arg4[%c0_12, %c0_13], %37 {strides = array<i32>} : memref<1x8xf32, #tpu.memory_space<vmem>>, vector<1x8xf32>,
    return
  }
  func.func @transform_0(%arg0: i32) -> (i32, i32) {
    %c0_i32 = arith.constant 0 : i32
    %c0_i32_0 = arith.constant 0 : i32
    return %c0_i32, %arg0 : i32, i32
  }
  func.func @transform_1(%arg0: i32) -> (i32, i32) {
    %c0_i32 = arith.constant 0 : i32
    %c0_i32_0 = arith.constant 0 : i32
    return %c0_i32, %arg0 : i32, i32
  }
  func.func @transform_2(%arg0: i32) -> (i32, i32) {
    %c0_i32 = arith.constant 0 : i32
    %c0_i32_0 = arith.constant 0 : i32
    return %c0_i32, %arg0 : i32, i32
  }
  func.func @transform_3(%arg0: i32) -> (i32, i32) {
    %c0_i32 = arith.constant 0 : i32
    %c0_i32_0 = arith.constant 0 : i32
    return %c0_i32, %arg0 : i32, i32
  }
}

</mosaic_0001>

<llo_original>
// kernel: tpu_custom_call.1
$region0: #{tpu_custom_call.1}
  #allocation0 [shape = 'u32[]', space=smem, size = 0x4, offset = 0x4, fixed_abs, tag = 'smem constant byte address 0x4 - core index']
  #allocation1 [shape = 'u32[144,128]{1,0:T(1,128)}', space=vmem, size = 0x12000, scoped, tag = 'internal scratch']
  %s0 = inlined_call_operand.hbm [shape: f32[4,8], index: 0, kind: input, shape index: {}]
  %s1 = inlined_call_operand.vmem [shape: s32[1,8], index: 1, kind: input, shape index: {}]
  %s2 = inlined_call_operand.hbm [shape: f32[1,8], index: 2, kind: output, shape index: {0}]
  %s3 = inlined_call_operand.hbm [shape: f32[1,8], index: 3, kind: output, shape index: {1}]
  %4 = xla_tuple %s2, %s3
  %s5 = sld [smem:[#allocation0]]
  $region30: #{tpu_custom_call.1} parent=0
    _
  %s7 = ssub.s32 1, %s5
  %s8 = scalar_select 0, %s7, %s5
  $region1: #{tpu_custom_call.1} parent=0
    #allocation2 [shape = 'u8[2048]{0}', space=vmem, size = 0x800, scoped, tag = 'input window, operand 0, single buffered']
    #allocation3 [shape = 's32[1]{0}', space=sflag, size = 0x4, scoped, tag = 'scoped memory for tpu_custom_call.1']
    #allocation4 [shape = 's32[1]{0}', space=sflag, size = 0x4, scoped, tag = 'scoped memory for tpu_custom_call.1']
    #allocation5 [shape = 'u8[512]{0}', space=vmem, size = 0x400, scoped, tag = 'output window, operand 0, single buffered']
    #allocation6 [shape = 'u8[512]{0}', space=vmem, size = 0x400, scoped, tag = 'output window, operand 1, single buffered']
    #allocation7 [shape = 's32[1]{0}', space=sflag, size = 0x4, scoped, tag = 'scoped memory for tpu_custom_call.1']
    %9 = vsyncpa [#allocation3], 0
    %10 = vsyncpa [#allocation4], 0
    %11 = vsyncpa [#allocation7], 0
    // Predicated region
    $region2: #{tpu_custom_call.1} parent=1 // pred_check
      _
    $region3: #{tpu_custom_call.1} parent=1 // pred_check_branch
      %13 = sbr.rel (0) target = $region5
    $region4: #{tpu_custom_call.1} parent=1 // pred_region
      %s15 = ssub.s32 64, 64
      %16 = vsyncadd [#allocation3], %s15
      %s18 = sshll.u32 [#allocation2], 4
      %s19 = int_to_ptr.vmem [resolvable:$true] %s18
      %21 = dma.hbm_to_vmem [thread:$0]  %s0, 64, %s19, [#allocation3]
    $region5: #{tpu_custom_call.1} parent=1 // pred_fallthru
      _
    // Predicated region
    $region6: #{tpu_custom_call.1} parent=1 // pred_check
      _
    $region7: #{tpu_custom_call.1} parent=1 // pred_check_branch
      %23 = sbr.rel (0) target = $region9
    $region8: #{tpu_custom_call.1} parent=1 // pred_region
      _
    $region9: #{tpu_custom_call.1} parent=1 // pred_fallthru
      _
    // Predicated region
    $region10: #{tpu_custom_call.1} parent=1 // pred_check
      _
    $region11: #{tpu_custom_call.1} parent=1 // pred_check_branch
      %25 = sbr.rel (0) target = $region13
    $region12: #{tpu_custom_call.1} parent=1 // pred_region
      %26 = dma.done [#allocation3], 64
    $region13: #{tpu_custom_call.1} parent=1 // pred_fallthru
      _
    %s27 = smul.u32 0, 8
    %v28 = vlaneseq
    %v29 = vand.u32 %v28, 127
    %v30 = vstv %s27
    %v31 = vadd.s32 %v30, %v29
    %vm32 = vcmp.lt.s32.totalorder %v31, 8
    %v33 = vld [vmem:[#allocation2] sm:$0xf]
    %v34 = vsel %vm32, 1, 0
    %vm35 = vcmp.eq.s32.totalorder %v34, 1
    %v36 = vsel %vm35, %v33, 0.0
    %v37 = vld [vmem:[%s1] sm:$0x1]
    %vm38 = vcmp.ne.s32.totalorder %v37, 4294967196
    %vm39 = vmand %vm32, %vm38
    %v40 = vlaneseq
    %v41 = vshrl.u32 %v40, 7
    %v42 = vlaneseq
    %v43 = vshrl.u32 %v42, 7
    %v44 = vsub.s32 0, %v43
    %v45 = vrot.slane %v37, %v44
    %vm46 = vcmp.eq.s32.totalorder %v41, %v45
    %v47 = vsel %vm46, %v36, 0.0
    %vm48 = vcmask 60416
    %v49 = vsel %vm48, %v47, 0.0
    %v50 = vrot.slane %v49, 4
    %v51 = vadd.f32 %v49, %v50
    %v52 = vrot.slane %v51, 2
    %v53 = vadd.f32 %v51, %v52
    %v54 = vrot.slane %v53, 1
    %v55 = vadd.f32 %v53, %v54
    %v56 = vsel %vm48, %v36, -inf
    %v57 = vrot.slane %v56, 4
    %v58 = vmax.f32 %v56, %v57
    %v59 = vrot.slane %v58, 2
    %v60 = vmax.f32 %v58, %v59
    %v61 = vrot.slane %v60, 1
    %v62 = vmax.f32 %v60, %v61
    %v63 = vsub.f32 %v36, %v62
    %v64 = vmul.f32 %v63, 1.442695
    %v65 = vpow.pop %v64
    %v66 = vsel %vm48, %v65, 0.0
    %v67 = vrot.slane %v66, 4
    %v68 = vadd.f32 %v66, %v67
    %v69 = vrot.slane %v68, 2
    %v70 = vadd.f32 %v68, %v69
    %v71 = vrot.slane %v70, 1
    %v72 = vadd.f32 %v70, %v71
    %v73 = vsub.f32 %v62, %v55
    %v74 = vlog2.pop %v72
    %v75 = vmul.f32 %v74, 0.6931472
    %v76 = vadd.f32 %v73, %v75
    %v77 = vsel %vm39, 1, 0
    %v78 = vcvt.s32.f32 %v77
    %v79 = vmul.f32 %v76, %v78
    %vm80 = vcmask 57344
    %81 = vst.msk [vmem:[#allocation5] sm:$0x1] %vm80, %v79
    %82 = vst.msk [vmem:[#allocation6] sm:$0x1] %vm80, %v78
    // Predicated region
    $region14: #{tpu_custom_call.1} parent=1 // pred_check
      _
    $region15: #{tpu_custom_call.1} parent=1 // pred_check_branch
      %84 = sbr.rel (0) target = $region17
    $region16: #{tpu_custom_call.1} parent=1 // pred_region
      %s86 = ssub.s32 16, 16
      %87 = vsyncadd [#allocation4], %s86
      %s89 = sshll.u32 [#allocation5], 4
      %s90 = int_to_ptr.vmem [resolvable:$true] %s89
      %92 = dma.vmem_to_hbm [thread:$0]  %s90, 16, %s2, [#allocation4]
    $region17: #{tpu_custom_call.1} parent=1 // pred_fallthru
      _
    // Predicated region
    $region18: #{tpu_custom_call.1} parent=1 // pred_check
      _
    $region19: #{tpu_custom_call.1} parent=1 // pred_check_branch
      %94 = sbr.rel (0) target = $region21
    $region20: #{tpu_custom_call.1} parent=1 // pred_region
      %s96 = ssub.s32 16, 16
      %97 = vsyncadd [#allocation7], %s96
      %s99 = sshll.u32 [#allocation6], 4
      %s100 = int_to_ptr.vmem [resolvable:$true] %s99
      %102 = dma.vmem_to_hbm [thread:$0]  %s100, 16, %s3, [#allocation7]
    $region21: #{tpu_custom_call.1} parent=1 // pred_fallthru
      _
    // Predicated region
    $region22: #{tpu_custom_call.1} parent=1 // pred_check
      _
    $region23: #{tpu_custom_call.1} parent=1 // pred_check_branch
      %104 = sbr.rel (0) target = $region25
    $region24: #{tpu_custom_call.1} parent=1 // pred_region
      %105 = dma.done [#allocation4], 16
    $region25: #{tpu_custom_call.1} parent=1 // pred_fallthru
      _
    // Predicated region
    $region26: #{tpu_custom_call.1} parent=1 // pred_check
      _
    $region27: #{tpu_custom_call.1} parent=1 // pred_check_branch
      %107 = sbr.rel (0) target = $region29
    $region28: #{tpu_custom_call.1} parent=1 // pred_region
      %108 = dma.done [#allocation7], 16
    $region29: #{tpu_custom_call.1} parent=1 // pred_fallthru
      _
    %109 = vsyncpa [#allocation3], 1
    %110 = vsyncpa [#allocation4], 1
    %111 = vsyncpa [#allocation7], 1

</llo_original>
